<compile_context>
chip_gen: v5e
topology: v5e:2x2
jax: 0.10.0
libtpu: 0.0.40
codegen_flags: <defaults>
</compile_context>

<pallas_src>
import numpy as np
import jax
import jax.numpy as jnp
from jax import lax
from jax.experimental import pallas as pl
from jax.experimental.pallas import tpu as pltpu


def _make_2tuple(x):
    if isinstance(x, tuple):
        assert len(x) == 2
        return x
    assert isinstance(x, int)
    return (x, x)


def _round_up(x, m):
    return ((x + m - 1) // m) * m


# ----------------------------------------------------------------------------
# Pallas kernels
# ----------------------------------------------------------------------------
def _gemm_bias_kernel(x_ref, w_ref, b_ref, o_ref):
    # Single K step: whole contraction in one MXU pass, fused f32->bf16 cast of
    # the activation (VPU) and fused bias add / downcast.
    w = w_ref[...]
    a = x_ref[...].astype(w.dtype)
    acc = jnp.dot(a, w, preferred_element_type=jnp.float32)
    o_ref[...] = (acc + b_ref[...]).astype(o_ref.dtype)


def _gemm_bias_acc_kernel(x_ref, w_ref, b_ref, o_ref, acc_ref):
    # Tiled K reduction with a resident f32 accumulator (huge-K fallback only).
    k = pl.program_id(1)

    @pl.when(k == 0)
    def _():
        acc_ref[...] = jnp.zeros_like(acc_ref)

    w = w_ref[...]
    acc_ref[...] += jnp.dot(
        x_ref[...].astype(w.dtype), w, preferred_element_type=jnp.float32
    )

    @pl.when(k == pl.num_programs(1) - 1)
    def _():
        o_ref[...] = (acc_ref[...] + b_ref[...]).astype(o_ref.dtype)


def _choose_tm(M, tm_max):
    """M tile: multiples of 16 (bf16 packs 2 rows/sublane); >=2 blocks when M is
    large enough so the 'parallel' M axis shards across both v7x TensorCores."""
    if M <= 32:
        return M  # block == full array dim: always legal, nothing to shard.
    tm = min(tm_max, _round_up(M, 16))
    if pl.cdiv(M, tm) < 2:
        tm = max(16, _round_up(pl.cdiv(M, 2), 16))
    return tm


def matmul_bias(
    x,
    w_f,
    b_row,
    *,
    out_dtype=jnp.bfloat16,
    tm_max=512,
    vmem_budget_bytes=20 << 20,   # pipeline-buffer budget, safe on v5e/v6e/v7x
    vmem_limit_bytes=32 << 20,    # raises v5e's 16 MiB default; default elsewhere
):
    """out = x @ w_f + b_row   (cast of x to w_f.dtype fused in-kernel).

    x:     (M, K)  any float dtype (typically f32 straight from the model input)
    w_f:   (K, E)  compute dtype (bf16), pre-permuted at init
    b_row: (1, E)  float32
    Returns (M, E) in out_dtype. No host-side padding of any operand.
    """
    M, K = x.shape
    K_w, E = w_f.shape
    assert K_w == K and b_row.shape == (1, E)

    xb = x.dtype.itemsize
    wb = w_f.dtype.itemsize
    ob = np.dtype(out_dtype).itemsize

    def _bufs(tm_, tk_):  # approx double-buffered pipeline VMEM footprint
        return 2 * (tm_ * tk_ * xb + tk_ * E * wb + tm_ * E * ob + E * 4)

    tm = _choose_tm(M, tm_max)
    # Prefer a single MXU pass over the whole K; shrink tm before tiling K.
    while tm >= 32 and _bufs(tm, K) > vmem_budget_bytes:
        tm = _round_up(tm // 2, 16)

    cost = pl.CostEstimate(
        flops=2 * M * K * E,
        transcendentals=0,
        bytes_accessed=M * K * xb + K * E * wb + M * E * ob + E * 4,
    )
    out_shape = jax.ShapeDtypeStruct((M, E), out_dtype)

    if _bufs(tm, K) <= vmem_budget_bytes:
        # Single K pass: no reduction loop, no accumulator scratch. Ragged last
        # M block is read/write masked by Pallas; junk rows never reach HBM.
        return pl.pallas_call(
            _gemm_bias_kernel,
            out_shape=out_shape,
            grid_spec=pltpu.PrefetchScalarGridSpec(
                num_scalar_prefetch=0,
                grid=(pl.cdiv(M, tm),),
                in_specs=[
                    pl.BlockSpec((tm, K), lambda i: (i, 0)),
                    pl.BlockSpec((K, E), lambda i: (0, 0)),
                    pl.BlockSpec((1, E), lambda i: (0, 0)),
                ],
                out_specs=pl.BlockSpec((tm, E), lambda i: (i, 0)),
            ),
            compiler_params=pltpu.CompilerParams(
                dimension_semantics=("parallel",),
                vmem_limit_bytes=vmem_limit_bytes,
            ),
            cost_estimate=cost,
        )(x, w_f, b_row)

    # Huge-K fallback: innermost 'arbitrary' reduction axis over K tiles.
    tk = next(
        (c for c in (4096, 2048, 1024, 512, 256, 128)
         if K % c == 0 and _bufs(tm, c) + tm * E * 4 <= vmem_budget_bytes),
        None,
    )
    # TODO(synk): K that is huge and not a multiple of 128 would need in-kernel
    # K masking; unreachable for this module (K = spectral_patch_size * H * W).
    assert tk is not None, f"unsupported contraction size K={K}"

    return pl.pallas_call(
        _gemm_bias_acc_kernel,
        out_shape=out_shape,
        grid_spec=pltpu.PrefetchScalarGridSpec(
            num_scalar_prefetch=0,
            grid=(pl.cdiv(M, tm), K // tk),
            in_specs=[
                pl.BlockSpec((tm, tk), lambda i, k: (i, k)),
                pl.BlockSpec((tk, E), lambda i, k: (k, 0)),
                pl.BlockSpec((1, E), lambda i, k: (0, 0)),
            ],
            out_specs=pl.BlockSpec((tm, E), lambda i, k: (i, 0)),
            scratch_shapes=[pltpu.VMEM((tm, E), jnp.float32)],
        ),
        compiler_params=pltpu.CompilerParams(
            dimension_semantics=("parallel", "arbitrary"),
            vmem_limit_bytes=vmem_limit_bytes,
        ),
        cost_estimate=cost,
    )(x, w_f, b_row)


# ----------------------------------------------------------------------------
# SpectralPatchEmbed (JAX wrapper around the Pallas GEMM kernel).
# ----------------------------------------------------------------------------
class SpectralPatchEmbed:
    def __init__(
        self,
        img_size=16,
        spectral_patch_size=2,
        in_chans=4,
        embed_dim=32,
        norm_layer=None,
        flatten_embedding=True,
        key=None,
        compute_dtype=jnp.bfloat16,
        out_dtype=jnp.bfloat16,
    ):
        image_HW = _make_2tuple(img_size)
        local_crop_size = _make_2tuple(img_size // 2)
        self.global_crop_size = image_HW
        self.local_crop_size = local_crop_size
        self.spectral_patch_size = spectral_patch_size
        self.spectral_split = in_chans // spectral_patch_size
        self.in_chans = in_chans
        self.embed_dim = embed_dim
        self.flatten_embedding = flatten_embedding
        self.compute_dtype = compute_dtype
        self.out_dtype = out_dtype
        # TODO(synk): only Identity norm implemented.
        assert norm_layer is None

        if key is None:
            key = jax.random.PRNGKey(0)
        kgw, kgb, klw, klb = jax.random.split(key, 4)

        k = spectral_patch_size
        hw_g = image_HW[0] * image_HW[1]
        hw_l = local_crop_size[0] * local_crop_size[1]

        def _init(kw, kb, hw):
            # Conv1d weight (out, in, kernel); PyTorch-style U(-1/sqrt(fan_in), .)
            bound = 1.0 / jnp.sqrt(hw * k)
            w = jax.random.uniform(
                kw, (embed_dim, hw, k), jnp.float32, -bound, bound
            )
            b = jax.random.uniform(kb, (embed_dim,), jnp.float32, -bound, bound)
            return w, b

        # Raw Conv1d parameters (kept for the reference / state-dict parity).
        self.w_global, self.b_global = _init(kgw, kgb, hw_g)
        self.w_local, self.b_local = _init(klw, klb, hw_l)

        # GEMM operands: permuted / cast ONCE, hoisted off the per-call path.
        # No K/E padding -- blocks equal to full dims are legal and the MXU pads
        # internally with zero HBM cost.
        self._gemm_global = self._prep_gemm(self.w_global, self.b_global)
        self._gemm_local = self._prep_gemm(self.w_local, self.b_local)

    def _prep_gemm(self, w, b):
        E, HW, k = w.shape
        K = HW * k
        # (E, HW, k) -> (k, HW, E) -> (K, E): row index j*HW + hw matches the
        # pure reshape x.reshape(B*T, k*HW) of the NCHW activation.
        w_f = jnp.transpose(w, (2, 1, 0)).reshape(K, E).astype(self.compute_dtype)
        b_row = b.reshape(1, E).astype(jnp.float32)
        return w_f, b_row, K

    def __call__(self, x):
        B, C, H, W = x.shape
        k = self.spectral_patch_size
        T = C // k
        HW = H * W

        if (H, W) == self.local_crop_size:
            w_f, b_row, K = self._gemm_local
        else:
            assert (H, W) == self.global_crop_size, (
                f"unsupported resolution {(H, W)}; expected "
                f"{self.global_crop_size} or {self.local_crop_size}"
            )
            w_f, b_row, K = self._gemm_global
        assert K == HW * k

        # Conv1d(kernel=stride=k) drops trailing channels if C % k != 0.
        if C != T * k:
            x = x[:, : T * k]

        # GEMM LHS straight from NCHW: zero-copy reshape, no transpose, no cast
        # (the f32 -> bf16 cast happens inside the kernel, fused with the GEMM).
        x_f = x.reshape(B * T, k * HW)

        out = matmul_bias(x_f, w_f, b_row, out_dtype=self.out_dtype)
        return out.reshape(B, T, self.embed_dim)  # norm = Identity


# ----------------------------------------------------------------------------
# Pure-JAX reference (lax conv, full f32) for the correctness check.
# ----------------------------------------------------------------------------
def reference_forward(module, x):
    B, C, H, W = x.shape
    x_r = jnp.transpose(x, (0, 2, 3, 1)).reshape(B, H * W, C)
    if (H, W) == module.local_crop_size:
        w, b = module.w_local, module.b_local
    else:
        w, b = module.w_global, module.b_global
    y = lax.conv_general_dilated(
        x_r,
        w,
        window_strides=(module.spectral_patch_size,),
        padding="VALID",
        dimension_numbers=("NCH", "OIH", "NCH"),
    )  # (B, E, C//k)
    y = y + b[None, :, None]
    return jnp.transpose(y, (0, 2, 1))  # (B, C//k, E)


if __name__ == "__main__":
    key = jax.random.PRNGKey(0)
    kx, kx2, kp = jax.random.split(key, 3)

    # Small shapes: img_size=16, in_chans=4, spectral_patch_size=2, embed_dim=32
    B, C, H, W = 2, 4, 16, 16
    module = SpectralPatchEmbed(
        img_size=16, spectral_patch_size=2, in_chans=4, embed_dim=32, key=kp
    )

    # Global-crop resolution (16x16): K = 512, single MXU pass.
    x = jax.random.normal(kx, (B, C, H, W), dtype=jnp.float32)
    out = jax.block_until_ready(module(x))
    ref = reference_forward(module, x)
    assert out.shape == (B, C // 2, 32), out.shape
    # bf16 compute / output with f32 accumulation -> loosened tolerance.
    assert jnp.allclose(out.astype(jnp.float32), ref, atol=5e-2, rtol=5e-2)

    # Local-crop resolution (8x8): exercises the local weights, K = 128.
    x_l = jax.random.normal(kx2, (B, C, 8, 8), dtype=jnp.float32)
    out_l = jax.block_until_ready(module(x_l))
    ref_l = reference_forward(module, x_l)
    assert out_l.shape == (B, C // 2, 32), out_l.shape
    assert jnp.allclose(out_l.astype(jnp.float32), ref_l, atol=5e-2, rtol=5e-2)

    print("KERNEL_OK")
</pallas_src>

<mosaic_0001>
module attributes {stable_mosaic.version = 11 : i64} {
  func.func @_gemm_bias_kernel(%arg0: i32, %arg1: memref<4x512xf32, #tpu.memory_space<vmem>>, %arg2: memref<512x32xbf16, #tpu.memory_space<vmem>>, %arg3: memref<1x32xf32, #tpu.memory_space<vmem>>, %arg4: memref<4x32xbf16, #tpu.memory_space<vmem>>) attributes {dimension_semantics = [#tpu.dimension_semantics<parallel>], iteration_bounds = array<i64: 1>, scalar_prefetch = 0 : i64, scratch_operands = 0 : i64, tpu.core_type = #tpu.core_type<tc>, window_params = [{transform_indices = @transform_0, window_bounds = array<i64: 4, 512>}, {pipeline_mode = #tpu.pipeline_mode<synchronous>, transform_indices = @transform_1, window_bounds = array<i64: 512, 32>}, {pipeline_mode = #tpu.pipeline_mode<synchronous>, transform_indices = @transform_2, window_bounds = array<i64: 1, 32>}, {transform_indices = @transform_3, window_bounds = array<i64: 4, 32>}]} {
    %c0 = arith.constant 0 : index
    %c0_0 = arith.constant 0 : index
    %0 = vector.load %arg2[%c0, %c0_0] : memref<512x32xbf16, #tpu.memory_space<vmem>>, vector<512x32xbf16>
    %c0_1 = arith.constant 0 : index
    %c0_2 = arith.constant 0 : index
    %1 = vector.load %arg1[%c0_1, %c0_2] : memref<4x512xf32, #tpu.memory_space<vmem>>, vector<4x512xf32>
    %2 = arith.truncf %1 : vector<4x512xf32> to vector<4x512xbf16>
    %cst = arith.constant dense<0.000000e+00> : vector<4x32xf32>
    %3 = tpu.matmul %2, %0, %cst {dimension_numbers = #tpu.dot_dimension_numbers<[1], [0], [0], [1], [0, 0, 1, 1], [], []>} : vector<4x512xbf16>, vector<512x32xbf16>, vector<4x32xf32> -> vector<4x32xf32>
    %c0_3 = arith.constant 0 : index
    %c0_4 = arith.constant 0 : index
    %4 = vector.load %arg3[%c0_3, %c0_4] : memref<1x32xf32, #tpu.memory_space<vmem>>, vector<1x32xf32>
    %5 = vector.broadcast %4 : vector<1x32xf32> to vector<4x32xf32>
    %6 = arith.addf %3, %5 : vector<4x32xf32>
    %7 = arith.truncf %6 : vector<4x32xf32> to vector<4x32xbf16>
    %c0_5 = arith.constant 0 : index
    %c0_6 = arith.constant 0 : index
    %8 = vector.load %arg4[%c0_5, %c0_6] : memref<4x32xbf16, #tpu.memory_space<vmem>>, vector<4x32xbf16>
    tpu.vector_store %arg4[%c0_5, %c0_6], %7 {strides = array<i32>} : memref<4x32xbf16, #tpu.memory_space<vmem>>, vector<4x32xbf16>,
    return
  }
  func.func @transform_0(%arg0: i32) -> (i32, i32) {
    %c0_i32 = arith.constant 0 : i32
    %c0_i32_0 = arith.constant 0 : i32
    return %arg0, %c0_i32 : i32, i32
  }
  func.func @transform_1(%arg0: i32) -> (i32, i32) {
    %c0_i32 = arith.constant 0 : i32
    %c0_i32_0 = arith.constant 0 : i32
    %c0_i32_1 = arith.constant 0 : i32
    return %c0_i32, %c0_i32_0 : i32, i32
  }
  func.func @transform_2(%arg0: i32) -> (i32, i32) {
    %c0_i32 = arith.constant 0 : i32
    %c0_i32_0 = arith.constant 0 : i32
    %c0_i32_1 = arith.constant 0 : i32
    return %c0_i32, %c0_i32_0 : i32, i32
  }
  func.func @transform_3(%arg0: i32) -> (i32, i32) {
    %c0_i32 = arith.constant 0 : i32
    %c0_i32_0 = arith.constant 0 : i32
    return %arg0, %c0_i32 : i32, i32
  }
}

</mosaic_0001>

<llo_original>
// kernel: tpu_custom_call.1
$region0: #{tpu_custom_call.1}
  #allocation0 [shape = 'u32[]', space=smem, size = 0x4, offset = 0x4, fixed_abs, tag = 'smem constant byte address 0x4 - core index']
  #allocation1 [shape = 'u32[72,128]{1,0:T(1,128)}', space=vmem, size = 0x9000, scoped, tag = 'internal scratch']
  %s0 = inlined_call_operand.vmem [shape: f32[4,512], index: 0, kind: input, shape index: {}]
  %s1 = inlined_call_operand.vmem [shape: bf16[512,32], index: 1, kind: input, shape index: {}]
  %s2 = inlined_call_operand.vmem [shape: f32[1,32], index: 2, kind: input, shape index: {}]
  %s3 = inlined_call_operand.hbm [shape: bf16[4,32], index: 3, kind: output, shape index: {}]
  %s4 = sld [smem:[#allocation0]]
  $region22: #{tpu_custom_call.1} parent=0
    _
  %s6 = ssub.s32 1, %s4
  %s7 = scalar_select 0, %s6, %s4
  $region1: #{tpu_custom_call.1} parent=0
    #allocation2 [shape = 'u8[1024]{0}', space=vmem, size = 0x400, scoped, tag = 'output window, operand 0, single buffered']
    #allocation3 [shape = 's32[1]{0}', space=sflag, size = 0x4, scoped, tag = 'scoped memory for tpu_custom_call.1']
    %8 = vsyncpa [#allocation3], 0
    // Predicated region
    $region2: #{tpu_custom_call.1} parent=1 // pred_check
      _
    $region3: #{tpu_custom_call.1} parent=1 // pred_check_branch
      %10 = sbr.rel (0) target = $region5
    $region4: #{tpu_custom_call.1} parent=1 // pred_region
      _
    $region5: #{tpu_custom_call.1} parent=1 // pred_fallthru
      _
    // Predicated region
    $region6: #{tpu_custom_call.1} parent=1 // pred_check
      _
    $region7: #{tpu_custom_call.1} parent=1 // pred_check_branch
      %12 = sbr.rel (0) target = $region9
    $region8: #{tpu_custom_call.1} parent=1 // pred_region
      _
    $region9: #{tpu_custom_call.1} parent=1 // pred_fallthru
      _
    // Predicated region
    $region10: #{tpu_custom_call.1} parent=1 // pred_check
      _
    $region11: #{tpu_custom_call.1} parent=1 // pred_check_branch
      %14 = sbr.rel (0) target = $region13
    $region12: #{tpu_custom_call.1} parent=1 // pred_region
      _
    $region13: #{tpu_custom_call.1} parent=1 // pred_fallthru
      _
    %v15 = vld [vmem:[%s1] sm:$0xf]
    %v16 = vld [vmem:[%s1 + $0x4] sm:$0xf]
    %v17 = vld [vmem:[%s1 + $0x8] sm:$0xf]
    %v18 = vld [vmem:[%s1 + $0xc] sm:$0xf]
    %v19 = vld [vmem:[%s1 + $0x10] sm:$0xf]
    %v20 = vld [vmem:[%s1 + $0x14] sm:$0xf]
    %v21 = vld [vmem:[%s1 + $0x18] sm:$0xf]
    %v22 = vld [vmem:[%s1 + $0x1c] sm:$0xf]
    %v23 = vld [vmem:[%s1 + $0x20] sm:$0xf]
    %v24 = vld [vmem:[%s1 + $0x24] sm:$0xf]
    %v25 = vld [vmem:[%s1 + $0x28] sm:$0xf]
    %v26 = vld [vmem:[%s1 + $0x2c] sm:$0xf]
    %v27 = vld [vmem:[%s1 + $0x30] sm:$0xf]
    %v28 = vld [vmem:[%s1 + $0x34] sm:$0xf]
    %v29 = vld [vmem:[%s1 + $0x38] sm:$0xf]
    %v30 = vld [vmem:[%s1 + $0x3c] sm:$0xf]
    %v31 = vld [vmem:[%s1 + $0x40] sm:$0xf]
    %v32 = vld [vmem:[%s1 + $0x44] sm:$0xf]
    %v33 = vld [vmem:[%s1 + $0x48] sm:$0xf]
    %v34 = vld [vmem:[%s1 + $0x4c] sm:$0xf]
    %v35 = vld [vmem:[%s1 + $0x50] sm:$0xf]
    %v36 = vld [vmem:[%s1 + $0x54] sm:$0xf]
    %v37 = vld [vmem:[%s1 + $0x58] sm:$0xf]
    %v38 = vld [vmem:[%s1 + $0x5c] sm:$0xf]
    %v39 = vld [vmem:[%s1 + $0x60] sm:$0xf]
    %v40 = vld [vmem:[%s1 + $0x64] sm:$0xf]
    %v41 = vld [vmem:[%s1 + $0x68] sm:$0xf]
    %v42 = vld [vmem:[%s1 + $0x6c] sm:$0xf]
    %v43 = vld [vmem:[%s1 + $0x70] sm:$0xf]
    %v44 = vld [vmem:[%s1 + $0x74] sm:$0xf]
    %v45 = vld [vmem:[%s1 + $0x78] sm:$0xf]
    %v46 = vld [vmem:[%s1 + $0x7c] sm:$0xf]
    %v47 = vld [vmem:[%s1 + $0x80] sm:$0xf]
    %v48 = vld [vmem:[%s1 + $0x84] sm:$0xf]
    %v49 = vld [vmem:[%s1 + $0x88] sm:$0xf]
    %v50 = vld [vmem:[%s1 + $0x8c] sm:$0xf]
    %v51 = vld [vmem:[%s1 + $0x90] sm:$0xf]
    %v52 = vld [vmem:[%s1 + $0x94] sm:$0xf]
    %v53 = vld [vmem:[%s1 + $0x98] sm:$0xf]
    %v54 = vld [vmem:[%s1 + $0x9c] sm:$0xf]
    %v55 = vld [vmem:[%s1 + $0xa0] sm:$0xf]
    %v56 = vld [vmem:[%s1 + $0xa4] sm:$0xf]
    %v57 = vld [vmem:[%s1 + $0xa8] sm:$0xf]
    %v58 = vld [vmem:[%s1 + $0xac] sm:$0xf]
    %v59 = vld [vmem:[%s1 + $0xb0] sm:$0xf]
    %v60 = vld [vmem:[%s1 + $0xb4] sm:$0xf]
    %v61 = vld [vmem:[%s1 + $0xb8] sm:$0xf]
    %v62 = vld [vmem:[%s1 + $0xbc] sm:$0xf]
    %v63 = vld [vmem:[%s1 + $0xc0] sm:$0xf]
    %v64 = vld [vmem:[%s1 + $0xc4] sm:$0xf]
    %v65 = vld [vmem:[%s1 + $0xc8] sm:$0xf]
    %v66 = vld [vmem:[%s1 + $0xcc] sm:$0xf]
    %v67 = vld [vmem:[%s1 + $0xd0] sm:$0xf]
    %v68 = vld [vmem:[%s1 + $0xd4] sm:$0xf]
    %v69 = vld [vmem:[%s1 + $0xd8] sm:$0xf]
    %v70 = vld [vmem:[%s1 + $0xdc] sm:$0xf]
    %v71 = vld [vmem:[%s1 + $0xe0] sm:$0xf]
    %v72 = vld [vmem:[%s1 + $0xe4] sm:$0xf]
    %v73 = vld [vmem:[%s1 + $0xe8] sm:$0xf]
    %v74 = vld [vmem:[%s1 + $0xec] sm:$0xf]
    %v75 = vld [vmem:[%s1 + $0xf0] sm:$0xf]
    %v76 = vld [vmem:[%s1 + $0xf4] sm:$0xf]
    %v77 = vld [vmem:[%s1 + $0xf8] sm:$0xf]
    %v78 = vld [vmem:[%s1 + $0xfc] sm:$0xf]
    %v79 = vld [vmem:[%s0] sm:$0xff]
    %v80 = vld [vmem:[%s0 + $0x8] sm:$0xff]
    %83 = vst [vmem:[#allocation1] ss:$2 sm:$0xff] %v79
    %s84 = scalar_lea.vmem [#allocation1], 16
    %85 = vst [vmem:[%s84] ss:$2 sm:$0xff] %v80
    %v86 = vld.sshfl [vmem:[#allocation1] sm:$0xff pattern:$0x75316420]
    %v87 = vld.sshfl [vmem:[#allocation1 + $0x8] sm:$0xff pattern:$0x75316420]
    %v88 = vld.sshfl [vmem:[#allocation1 + $0x10] sm:$0xff pattern:$0x75316420]
    %v89 = vld.sshfl [vmem:[#allocation1 + $0x18] sm:$0xff pattern:$0x75316420]
    %v94 = vpack.c.bf16 %v86, %v86
    %v95 = vpack.c.bf16 %v87, %v87
    %v96 = vpack.c.bf16 %v88, %v88
    %v97 = vpack.c.bf16 %v89, %v89
    %v98 = vld [vmem:[%s2] sm:$0x1]
    %v100 = vperm.slane %v98, 0
    %v166 = vunpack.c.l.b16 %v15
    %v167 = vunpack.c.l.b16 %v16
    %v168 = vunpack.c.l.b16 %v17
    %v169 = vunpack.c.l.b16 %v18
    %v170 = vunpack.c.l.b16 %v19
    %v171 = vunpack.c.l.b16 %v20
    %v172 = vunpack.c.l.b16 %v21
    %v173 = vunpack.c.l.b16 %v22
    %v174 = vunpack.c.l.b16 %v23
    %v175 = vunpack.c.l.b16 %v24
    %v176 = vunpack.c.l.b16 %v25
    %v177 = vunpack.c.l.b16 %v26
    %v178 = vunpack.c.l.b16 %v27
    %v179 = vunpack.c.l.b16 %v28
    %v180 = vunpack.c.l.b16 %v29
    %v181 = vunpack.c.l.b16 %v30
    %v182 = vunpack.c.l.b16 %v31
    %v183 = vunpack.c.l.b16 %v32
    %v184 = vunpack.c.l.b16 %v33
    %v185 = vunpack.c.l.b16 %v34
    %v186 = vunpack.c.l.b16 %v35
    %v187 = vunpack.c.l.b16 %v36
    %v188 = vunpack.c.l.b16 %v37
    %v189 = vunpack.c.l.b16 %v38
    %v190 = vunpack.c.l.b16 %v39
    %v191 = vunpack.c.l.b16 %v40
    %v192 = vunpack.c.l.b16 %v41
    %v193 = vunpack.c.l.b16 %v42
    %v194 = vunpack.c.l.b16 %v43
    %v195 = vunpack.c.l.b16 %v44
    %v196 = vunpack.c.l.b16 %v45
    %v197 = vunpack.c.l.b16 %v46
    %v198 = vunpack.c.l.b16 %v47
    %v199 = vunpack.c.l.b16 %v48
    %v200 = vunpack.c.l.b16 %v49
    %v201 = vunpack.c.l.b16 %v50
    %v202 = vunpack.c.l.b16 %v51
    %v203 = vunpack.c.l.b16 %v52
    %v204 = vunpack.c.l.b16 %v53
    %v205 = vunpack.c.l.b16 %v54
    %v206 = vunpack.c.l.b16 %v55
    %v207 = vunpack.c.l.b16 %v56
    %v208 = vunpack.c.l.b16 %v57
    %v209 = vunpack.c.l.b16 %v58
    %v210 = vunpack.c.l.b16 %v59
    %v211 = vunpack.c.l.b16 %v60
    %v212 = vunpack.c.l.b16 %v61
    %v213 = vunpack.c.l.b16 %v62
    %v214 = vunpack.c.l.b16 %v63
    %v215 = vunpack.c.l.b16 %v64
    %v216 = vunpack.c.l.b16 %v65
    %v217 = vunpack.c.l.b16 %v66
    %v218 = vunpack.c.l.b16 %v67
    %v219 = vunpack.c.l.b16 %v68
    %v220 = vunpack.c.l.b16 %v69
    %v221 = vunpack.c.l.b16 %v70
    %v222 = vunpack.c.l.b16 %v71
    %v223 = vunpack.c.l.b16 %v72
    %v224 = vunpack.c.l.b16 %v73
    %v225 = vunpack.c.l.b16 %v74
    %v226 = vunpack.c.l.b16 %v75
    %v227 = vunpack.c.l.b16 %v76
    %v228 = vunpack.c.l.b16 %v77
    %v229 = vunpack.c.l.b16 %v78
    %v230 = vpack.c.b16 %v167, %v166
    %v231 = vpack.c.b16 %v169, %v168
    %v232 = vpack.c.b16 %v171, %v170
    %v233 = vpack.c.b16 %v173, %v172
    %v234 = vpack.c.b16 %v175, %v174
    %v235 = vpack.c.b16 %v177, %v176
    %v236 = vpack.c.b16 %v179, %v178
    %v237 = vpack.c.b16 %v181, %v180
    %v238 = vpack.c.b16 %v183, %v182
    %v239 = vpack.c.b16 %v185, %v184
    %v240 = vpack.c.b16 %v187, %v186
    %v241 = vpack.c.b16 %v189, %v188
    %v242 = vpack.c.b16 %v191, %v190
    %v243 = vpack.c.b16 %v193, %v192
    %v244 = vpack.c.b16 %v195, %v194
    %v245 = vpack.c.b16 %v197, %v196
    %v246 = vpack.c.b16 %v199, %v198
    %v247 = vpack.c.b16 %v201, %v200
    %v248 = vpack.c.b16 %v203, %v202
    %v249 = vpack.c.b16 %v205, %v204
    %v250 = vpack.c.b16 %v207, %v206
    %v251 = vpack.c.b16 %v209, %v208
    %v252 = vpack.c.b16 %v211, %v210
    %v253 = vpack.c.b16 %v213, %v212
    %v254 = vpack.c.b16 %v215, %v214
    %v255 = vpack.c.b16 %v217, %v216
    %v256 = vpack.c.b16 %v219, %v218
    %v257 = vpack.c.b16 %v221, %v220
    %v258 = vpack.c.b16 %v223, %v222
    %v259 = vpack.c.b16 %v225, %v224
    %v260 = vpack.c.b16 %v227, %v226
    %v261 = vpack.c.b16 %v229, %v228
    %294 = vmatpush.bf16.msra.mxu0 %v237
    %295 = vmatpush.bf16.msra.mxu0 %v236
    %296 = vmatpush.bf16.msra.mxu0 %v235
    %297 = vmatpush.bf16.msra.mxu0 %v234
    %298 = vmatpush.bf16.msra.mxu0 %v233
    %299 = vmatpush.bf16.msra.mxu0 %v232
    %300 = vmatpush.bf16.msra.mxu0 %v231
    %301 = vmatpush.bf16.msra.mxu0 %v230
    %302 = vmatmul.bf16.gmra.mxu0 %v94
    %v303 = vpop.f32.mrf.mxu0
    %v304 = vadd.f32 %v100, %v303
    %v305 = vpop.f32.mrf.mxu0
    %306 = vdwg.mxu0
    %307 = vmatpush.bf16.msra.mxu0 %v245
    %308 = vmatpush.bf16.msra.mxu0 %v244
    %309 = vmatpush.bf16.msra.mxu0 %v243
    %310 = vmatpush.bf16.msra.mxu0 %v242
    %311 = vmatpush.bf16.msra.mxu0 %v241
    %312 = vmatpush.bf16.msra.mxu0 %v240
    %313 = vmatpush.bf16.msra.mxu0 %v239
    %314 = vmatpush.bf16.msra.mxu0 %v238
    %315 = vmatmul.bf16.gmra.mxu0 %v95
    %v316 = vpop.f32.mrf.mxu0
    %v317 = vadd.f32 %v304, %v316
    %v318 = vpop.f32.mrf.mxu0
    %319 = vdwg.mxu0
    %320 = vmatpush.bf16.msra.mxu0 %v253
    %321 = vmatpush.bf16.msra.mxu0 %v252
    %322 = vmatpush.bf16.msra.mxu0 %v251
    %323 = vmatpush.bf16.msra.mxu0 %v250
    %324 = vmatpush.bf16.msra.mxu0 %v249
    %325 = vmatpush.bf16.msra.mxu0 %v248
    %326 = vmatpush.bf16.msra.mxu0 %v247
    %327 = vmatpush.bf16.msra.mxu0 %v246
    %328 = vmatmul.bf16.gmra.mxu0 %v96
    %v329 = vpop.f32.mrf.mxu0
    %v330 = vadd.f32 %v317, %v329
    %v331 = vpop.f32.mrf.mxu0
    %332 = vdwg.mxu0
    %333 = vmatpush.bf16.msra.mxu0 %v261
    %334 = vmatpush.bf16.msra.mxu0 %v260
    %335 = vmatpush.bf16.msra.mxu0 %v259
    %336 = vmatpush.bf16.msra.mxu0 %v258
    %337 = vmatpush.bf16.msra.mxu0 %v257
    %338 = vmatpush.bf16.msra.mxu0 %v256
    %339 = vmatpush.bf16.msra.mxu0 %v255
    %340 = vmatpush.bf16.msra.mxu0 %v254
    %341 = vmatmul.bf16.gmra.mxu0 %v97
    %v342 = vpop.f32.mrf.mxu0
    %v343 = vadd.f32 %v330, %v342
    %v344 = vpop.f32.mrf.mxu0
    %345 = vdwg.mxu0
    %v346 = vpack.c.bf16 %v343, %v343
    %vm347 = vcmask 254976
    %348 = vst.msk [vmem:[#allocation2] sm:$0x3] %vm347, %v346
    // Predicated region
    $region14: #{tpu_custom_call.1} parent=1 // pred_check
      _
    $region15: #{tpu_custom_call.1} parent=1 // pred_check_branch
      %350 = sbr.rel (0) target = $region17
    $region16: #{tpu_custom_call.1} parent=1 // pred_region
      %352 = vsyncadd [#allocation3], 0
      %s354 = sshll.u32 [#allocation2], 4
      %s355 = int_to_ptr.vmem [resolvable:$true] %s354
      %s356 = sshll.u32 %s3, 4
      %s357 = int_to_ptr.hbm [resolvable:$true] %s356
      %359 = dma.vmem_to_hbm [thread:$0]  %s355, 32, %s357, [#allocation3]
    $region17: #{tpu_custom_call.1} parent=1 // pred_fallthru
      _
    // Predicated region
    $region18: #{tpu_custom_call.1} parent=1 // pred_check
      _
    $region19: #{tpu_custom_call.1} parent=1 // pred_check_branch
      %361 = sbr.rel (0) target = $region21
    $region20: #{tpu_custom_call.1} parent=1 // pred_region
      %363 = dma.done [#allocation3], 32
    $region21: #{tpu_custom_call.1} parent=1 // pred_fallthru
      _
    %364 = vsyncpa [#allocation3], 1

</llo_original>
